<compile_context>
chip_gen: v5e
topology: v5e:2x2
jax: 0.10.0
libtpu: 0.0.40
codegen_flags: <defaults>
</compile_context>

<pallas_src>
import math
from functools import partial

import jax
import jax.numpy as jnp
from jax import lax
from jax.experimental import pallas as pl
from jax.experimental.pallas import tpu as pltpu

NEG = -1e30       # finite "-inf" keeps the masked softmax NaN-free
TIE_EPS = 1e-6    # column tie-break for unique row max in top-k
LANE = 128
SUBLANE = 8


def _round_up(x, m):
    return (x + m - 1) // m * m


def _leaky_relu(x, slope=0.2):
    return jnp.where(x >= 0, x, slope * x)


def _nt(a_bf, b_bf):
    # y[m, n] = sum_k a[m, k] * b[n, k]  ("NT": contract last dims of both).
    # Operands are already bf16; f32 accumulation -> full-rate MXU, no
    # materialized transposes.
    return lax.dot_general(a_bf, b_bf, (((1,), (1,)), ((), ())),
                           preferred_element_type=jnp.float32)


def _mm(a_bf, b_bf):
    # plain [m,k] @ [k,n] matmul, bf16 operands, f32 accumulation.
    return jnp.dot(a_bf, b_bf, preferred_element_type=jnp.float32)


def _masked_row_softmax(att, mask):
    # Softmax over the last axis restricted to selected edges (boolean mask).
    # Rows with no selected entry yield exact zeros (matches
    # torch.sparse.softmax / sparse.mm on empty rows).
    masked = jnp.where(mask, att, NEG)
    mx = jnp.max(masked, axis=1, keepdims=True)
    e = jnp.where(mask, jnp.exp(masked - mx), 0.0)
    denom = jnp.sum(e, axis=1, keepdims=True)
    safe = jnp.where(denom > 0, denom, 1.0)
    return e * pl.reciprocal(safe, approx=True)


def intent_graph_kernel(item_ref, intent_ref, w_ref, wa_ref, wb_ref, out_ref,
                        *, alpha, topk, n_items, n_intents):
    item_f32 = item_ref[...]                         # [Nip, Hp] f32 (padded)
    item_bf = item_f32.astype(jnp.bfloat16)          # cast once, reused 4x
    intent_bf = intent_ref[...]                      # [Njp, Hp] bf16 (padded)
    w = w_ref[...]                                   # [Hp, Hp]  bf16 (= wq.T @ wk)
    wa = wa_ref[...].astype(jnp.bfloat16)            # [1, Hp]
    wb = wb_ref[...].astype(jnp.bfloat16)            # [1, Hp]

    ni_p = item_bf.shape[0]
    nj_p = intent_bf.shape[0]

    # Similarity logits: sim = item @ wq.T @ wk @ intent.T  (softmax / scale
    # dropped: top-k selection is invariant under monotone per-row maps).
    qw = _mm(item_bf, w)                             # [Nip, Hp]  f32
    sim = _nt(qw.astype(jnp.bfloat16), intent_bf)    # [Nip, Njp] f32

    col = lax.broadcasted_iota(jnp.int32, (ni_p, nj_p), 1)
    col_valid = col < n_intents                                   # padded intents
    row_valid = lax.broadcasted_iota(jnp.int32, (ni_p, 1), 0) < n_items

    # Top-3 intents per item.  A tiny column-dependent bias makes the per-row
    # max unique, so one XLU reduction per step suffices.
    work = jnp.where(col_valid, sim - col.astype(jnp.float32) * TIE_EPS, NEG)
    mask = jnp.zeros((ni_p, nj_p), dtype=jnp.bool_)
    for _ in range(topk):
        row_max = jnp.max(work, axis=1, keepdims=True)
        sel = work == row_max                        # exactly one col per row
        mask = jnp.logical_or(mask, sel)
        work = jnp.where(sel, NEG, work)             # never reselect
    mask = jnp.logical_and(mask, row_valid)          # padded item rows: no edges

    # Intent-major orientation of the edge mask (single small transpose; done
    # via f32 for robust lowering, then back to bool).
    mask_t = mask.astype(jnp.float32).T > 0.0        # [Njp, Nip]

    # ---- GNNCell (sparse ops realized densely over the top-3 edge mask) ----
    # att1[j, i] = leakyrelu(la(intent[j] * item[i])) on edges (intent j, item i)
    att1 = _leaky_relu(_nt(intent_bf * wa, item_bf))             # [Njp, Nip]
    p1 = _masked_row_softmax(att1, mask_t)                       # softmax over items
    intent_new = _mm(p1.astype(jnp.bfloat16), item_bf)           # [Njp, Hp] f32
    intent_new_bf = intent_new.astype(jnp.bfloat16)

    # att2[i, j] = leakyrelu(lb(item[i] * intent_new[j])) on edges (item i, intent j)
    att2 = _leaky_relu(_nt(item_bf * wb, intent_new_bf))         # [Nip, Njp]
    p2 = _masked_row_softmax(att2, mask)                         # softmax over intents
    item_nei = _mm(p2.astype(jnp.bfloat16), intent_new_bf)       # [Nip, Hp] f32

    out_ref[...] = alpha * item_f32 + (1.0 - alpha) * item_nei


def _pad2(x, rows, cols, dtype):
    x = x.astype(dtype)
    return jnp.pad(x, ((0, rows - x.shape[0]), (0, cols - x.shape[1])))


@partial(jax.jit, static_argnames=("alpha", "topk"))
def intent_graph(item_emb, intent_emb, wq, wk, wa, wb, *, alpha, topk=3):
    n_items, hidden = item_emb.shape
    n_intents = intent_emb.shape[0]
    assert n_intents >= topk, "need at least `topk` intents"

    # Lane-dense padding: hidden and n_intents to 128; item rows to a sublane
    # multiple.  Zero padding is exact (padded rows/cols are masked out).
    hp = _round_up(hidden, LANE)
    njp = _round_up(n_intents, LANE)
    nip = _round_up(n_items, SUBLANE)

    # Fold lq/lk: sim = item @ wq.T @ wk @ intent.T   (weights are nn.Linear
    # layout [out, in]).  Done in f32 once, under the same jit as the kernel.
    w = jnp.dot(wq.T, wk, preferred_element_type=jnp.float32)

    item_p = _pad2(item_emb, nip, hp, jnp.float32)      # f32 (needed for blend)
    intent_p = _pad2(intent_emb, njp, hp, jnp.bfloat16)  # pre-cast for the MXU
    w_p = _pad2(w, hp, hp, jnp.bfloat16)
    wa_p = _pad2(wa, 1, hp, jnp.float32)
    wb_p = _pad2(wb, 1, hp, jnp.float32)

    kernel = partial(intent_graph_kernel, alpha=float(alpha), topk=int(topk),
                     n_items=n_items, n_intents=n_intents)
    vmem = pl.BlockSpec(memory_space=pltpu.MemorySpace.VMEM)

    # Chip-aware scoped-VMEM limit: sized to the working set with headroom,
    # capped at half of physical VMEM (v7x has only 64 MiB).
    working = 4 * (3 * nip * hp + 3 * njp * hp + hp * hp
                   + 8 * nip * njp + 4 * njp * nip)
    try:
        phys_vmem = int(pltpu.get_tpu_info().vmem_capacity_bytes)
    except Exception:
        phys_vmem = 64 * 2**20
    vmem_limit = int(min(phys_vmem // 2, max(4 * 2**20, 4 * working)))

    out_p = pl.pallas_call(
        kernel,
        out_shape=jax.ShapeDtypeStruct((nip, hp), jnp.float32),
        in_specs=[vmem] * 5,
        out_specs=vmem,
        compiler_params=pltpu.CompilerParams(vmem_limit_bytes=vmem_limit),
    )(item_p, intent_p, w_p, wa_p, wb_p)

    return out_p[:n_items, :hidden]


if __name__ == "__main__":
    hidden = 32
    n_items = 64
    n_intents = 16
    alpha = 0.5

    key = jax.random.PRNGKey(0)
    k_item, k_intent, k_wq, k_wk, k_wa, k_wb = jax.random.split(key, 6)

    item_emb = jax.random.normal(k_item, (n_items, hidden), dtype=jnp.float32)
    intent_emb = jax.random.normal(k_intent, (n_intents, hidden), dtype=jnp.float32)

    # nn.Linear-style init: U(-1/sqrt(in), 1/sqrt(in)), weight layout [out, in]
    bound = 1.0 / math.sqrt(hidden)
    wq = jax.random.uniform(k_wq, (hidden, hidden), jnp.float32, -bound, bound)
    wk = jax.random.uniform(k_wk, (hidden, hidden), jnp.float32, -bound, bound)
    wa = jax.random.uniform(k_wa, (1, hidden), jnp.float32, -bound, bound)
    wb = jax.random.uniform(k_wb, (1, hidden), jnp.float32, -bound, bound)

    out = intent_graph(item_emb, intent_emb, wq, wk, wa, wb, alpha=alpha, topk=3)
    out = jax.block_until_ready(out)

    assert out.shape == (n_items, hidden)
    assert bool(jnp.all(jnp.isfinite(out)))
    print("KERNEL_OK")
</pallas_src>

<mosaic_0001>
module attributes {stable_mosaic.version = 11 : i64} {
  func.func @intent_graph_kernel(%arg0: memref<64x128xf32, #tpu.memory_space<vmem>>, %arg1: memref<128x128xbf16, #tpu.memory_space<vmem>>, %arg2: memref<128x128xbf16, #tpu.memory_space<vmem>>, %arg3: memref<1x128xf32, #tpu.memory_space<vmem>>, %arg4: memref<1x128xf32, #tpu.memory_space<vmem>>, %arg5: memref<64x128xf32, #tpu.memory_space<vmem>>) attributes {dimension_semantics = [], scalar_prefetch = 0 : i64, scratch_operands = 0 : i64, tpu.core_type = #tpu.core_type<tc>} {
    %c0 = arith.constant 0 : index
    %c0_0 = arith.constant 0 : index
    %0 = vector.load %arg0[%c0, %c0_0] : memref<64x128xf32, #tpu.memory_space<vmem>>, vector<64x128xf32>
    %1 = arith.truncf %0 : vector<64x128xf32> to vector<64x128xbf16>
    %c0_1 = arith.constant 0 : index
    %c0_2 = arith.constant 0 : index
    %2 = vector.load %arg1[%c0_1, %c0_2] : memref<128x128xbf16, #tpu.memory_space<vmem>>, vector<128x128xbf16>
    %c0_3 = arith.constant 0 : index
    %c0_4 = arith.constant 0 : index
    %3 = vector.load %arg2[%c0_3, %c0_4] : memref<128x128xbf16, #tpu.memory_space<vmem>>, vector<128x128xbf16>
    %c0_5 = arith.constant 0 : index
    %c0_6 = arith.constant 0 : index
    %4 = vector.load %arg3[%c0_5, %c0_6] : memref<1x128xf32, #tpu.memory_space<vmem>>, vector<1x128xf32>
    %5 = arith.truncf %4 : vector<1x128xf32> to vector<1x128xbf16>
    %c0_7 = arith.constant 0 : index
    %c0_8 = arith.constant 0 : index
    %6 = vector.load %arg4[%c0_7, %c0_8] : memref<1x128xf32, #tpu.memory_space<vmem>>, vector<1x128xf32>
    %7 = arith.truncf %6 : vector<1x128xf32> to vector<1x128xbf16>
    %cst = arith.constant dense<0.000000e+00> : vector<64x128xf32>
    %8 = tpu.matmul %1, %3, %cst {dimension_numbers = #tpu.dot_dimension_numbers<[1], [0], [0], [1], [0, 0, 1, 1], [], []>} : vector<64x128xbf16>, vector<128x128xbf16>, vector<64x128xf32> -> vector<64x128xf32>
    %9 = arith.truncf %8 : vector<64x128xf32> to vector<64x128xbf16>
    %cst_9 = arith.constant dense<0.000000e+00> : vector<64x128xf32>
    %10 = tpu.matmul %9, %2, %cst_9 {dimension_numbers = #tpu.dot_dimension_numbers<[1], [1], [0], [0], [0, 0, 1, 0], [], []>} : vector<64x128xbf16>, vector<128x128xbf16>, vector<64x128xf32> -> vector<64x128xf32>
    %11 = tpu.iota {dimensions = array<i32: 1>} : vector<64x128xi32>
    %c16_i32 = arith.constant 16 : i32
    %12 = vector.broadcast %c16_i32 : i32 to vector<64x128xi32>
    %13 = arith.cmpi slt, %11, %12 : vector<64x128xi32>
    %14 = tpu.iota {dimensions = array<i32: 0>} : vector<64x1xi32>
    %c64_i32 = arith.constant 64 : i32
    %15 = vector.broadcast %c64_i32 : i32 to vector<64x1xi32>
    %16 = arith.cmpi slt, %14, %15 : vector<64x1xi32>
    %17 = arith.sitofp %11 : vector<64x128xi32> to vector<64x128xf32>
    %cst_10 = arith.constant 9.99999997E-7 : f32
    %18 = vector.broadcast %cst_10 : f32 to vector<64x128xf32>
    %19 = arith.mulf %17, %18 : vector<64x128xf32>
    %20 = arith.subf %10, %19 : vector<64x128xf32>
    %cst_11 = arith.constant -1.000000e+30 : f32
    %21 = vector.broadcast %cst_11 : f32 to vector<64x128xf32>
    %22 = arith.select %13, %20, %21 : vector<64x128xi1>, vector<64x128xf32>
    %false = arith.constant false
    %23 = vector.broadcast %false : i1 to vector<64x128xi1>
    %cst_12 = arith.constant dense<0xFF800000> : vector<64xf32>
    %24 = vector.multi_reduction <maximumf>, %22, %cst_12 [1] : vector<64x128xf32> to vector<64xf32>
    %25 = vector.shape_cast %24 : vector<64xf32> to vector<64x1xf32>
    %26 = vector.broadcast %25 : vector<64x1xf32> to vector<64x128xf32>
    %27 = arith.cmpf oeq, %22, %26 : vector<64x128xf32>
    %28 = arith.ori %23, %27 : vector<64x128xi1>
    %cst_13 = arith.constant -1.000000e+30 : f32
    %29 = vector.broadcast %cst_13 : f32 to vector<64x128xf32>
    %30 = arith.select %27, %29, %22 : vector<64x128xi1>, vector<64x128xf32>
    %cst_14 = arith.constant dense<0xFF800000> : vector<64xf32>
    %31 = vector.multi_reduction <maximumf>, %30, %cst_14 [1] : vector<64x128xf32> to vector<64xf32>
    %32 = vector.shape_cast %31 : vector<64xf32> to vector<64x1xf32>
    %33 = vector.broadcast %32 : vector<64x1xf32> to vector<64x128xf32>
    %34 = arith.cmpf oeq, %30, %33 : vector<64x128xf32>
    %35 = arith.ori %28, %34 : vector<64x128xi1>
    %cst_15 = arith.constant -1.000000e+30 : f32
    %36 = vector.broadcast %cst_15 : f32 to vector<64x128xf32>
    %37 = arith.select %34, %36, %30 : vector<64x128xi1>, vector<64x128xf32>
    %cst_16 = arith.constant dense<0xFF800000> : vector<64xf32>
    %38 = vector.multi_reduction <maximumf>, %37, %cst_16 [1] : vector<64x128xf32> to vector<64xf32>
    %39 = vector.shape_cast %38 : vector<64xf32> to vector<64x1xf32>
    %40 = vector.broadcast %39 : vector<64x1xf32> to vector<64x128xf32>
    %41 = arith.cmpf oeq, %37, %40 : vector<64x128xf32>
    %42 = arith.ori %35, %41 : vector<64x128xi1>
    %43 = vector.broadcast %16 : vector<64x1xi1> to vector<64x128xi1>
    %44 = arith.andi %42, %43 : vector<64x128xi1>
    %45 = arith.extui %44 : vector<64x128xi1> to vector<64x128xi32>
    %46 = arith.sitofp %45 : vector<64x128xi32> to vector<64x128xf32>
    %47 = tpu.transpose %46, [1, 0] : vector<64x128xf32> -> vector<128x64xf32>
    %cst_17 = arith.constant 0.000000e+00 : f32
    %48 = vector.broadcast %cst_17 : f32 to vector<128x64xf32>
    %49 = arith.cmpf ogt, %47, %48 : vector<128x64xf32>
    %50 = vector.broadcast %5 : vector<1x128xbf16> to vector<128x128xbf16>
    %51 = arith.mulf %2, %50 : vector<128x128xbf16>
    %cst_18 = arith.constant dense<0.000000e+00> : vector<128x64xf32>
    %52 = tpu.matmul %51, %1, %cst_18 {dimension_numbers = #tpu.dot_dimension_numbers<[1], [1], [0], [0], [0, 0, 1, 0], [], []>} : vector<128x128xbf16>, vector<64x128xbf16>, vector<128x64xf32> -> vector<128x64xf32>
    %cst_19 = arith.constant 0.000000e+00 : f32
    %53 = vector.broadcast %cst_19 : f32 to vector<128x64xf32>
    %54 = arith.cmpf oge, %52, %53 : vector<128x64xf32>
    %cst_20 = arith.constant 2.000000e-01 : f32
    %55 = vector.broadcast %cst_20 : f32 to vector<128x64xf32>
    %56 = arith.mulf %55, %52 : vector<128x64xf32>
    %57 = arith.select %54, %52, %56 : vector<128x64xi1>, vector<128x64xf32>
    %cst_21 = arith.constant -1.000000e+30 : f32
    %58 = vector.broadcast %cst_21 : f32 to vector<128x64xf32>
    %59 = arith.select %49, %57, %58 : vector<128x64xi1>, vector<128x64xf32>
    %cst_22 = arith.constant dense<0xFF800000> : vector<128xf32>
    %60 = vector.multi_reduction <maximumf>, %59, %cst_22 [1] : vector<128x64xf32> to vector<128xf32>
    %61 = vector.shape_cast %60 : vector<128xf32> to vector<128x1xf32>
    %62 = vector.broadcast %61 : vector<128x1xf32> to vector<128x64xf32>
    %63 = arith.subf %59, %62 : vector<128x64xf32>
    %64 = math.exp %63 : vector<128x64xf32>
    %cst_23 = arith.constant 0.000000e+00 : f32
    %65 = vector.broadcast %cst_23 : f32 to vector<128x64xf32>
    %66 = arith.select %49, %64, %65 : vector<128x64xi1>, vector<128x64xf32>
    %cst_24 = arith.constant dense<0.000000e+00> : vector<128xf32>
    %67 = vector.multi_reduction <add>, %66, %cst_24 [1] : vector<128x64xf32> to vector<128xf32>
    %68 = vector.shape_cast %67 : vector<128xf32> to vector<128x1xf32>
    %cst_25 = arith.constant 0.000000e+00 : f32
    %69 = vector.broadcast %cst_25 : f32 to vector<128x1xf32>
    %70 = arith.cmpf ogt, %68, %69 : vector<128x1xf32>
    %cst_26 = arith.constant 1.000000e+00 : f32
    %71 = vector.broadcast %cst_26 : f32 to vector<128x1xf32>
    %72 = arith.select %70, %68, %71 : vector<128x1xi1>, vector<128x1xf32>
    %73 = tpu.reciprocal %72 {approx = true} : vector<128x1xf32> -> vector<128x1xf32>
    %74 = vector.broadcast %73 : vector<128x1xf32> to vector<128x64xf32>
    %75 = arith.mulf %66, %74 : vector<128x64xf32>
    %76 = arith.truncf %75 : vector<128x64xf32> to vector<128x64xbf16>
    %cst_27 = arith.constant dense<0.000000e+00> : vector<128x128xf32>
    %77 = tpu.matmul %76, %1, %cst_27 {dimension_numbers = #tpu.dot_dimension_numbers<[1], [0], [0], [1], [0, 0, 1, 1], [], []>} : vector<128x64xbf16>, vector<64x128xbf16>, vector<128x128xf32> -> vector<128x128xf32>
    %78 = arith.truncf %77 : vector<128x128xf32> to vector<128x128xbf16>
    %79 = vector.broadcast %7 : vector<1x128xbf16> to vector<64x128xbf16>
    %80 = arith.mulf %1, %79 : vector<64x128xbf16>
    %cst_28 = arith.constant dense<0.000000e+00> : vector<64x128xf32>
    %81 = tpu.matmul %80, %78, %cst_28 {dimension_numbers = #tpu.dot_dimension_numbers<[1], [1], [0], [0], [0, 0, 1, 0], [], []>} : vector<64x128xbf16>, vector<128x128xbf16>, vector<64x128xf32> -> vector<64x128xf32>
    %cst_29 = arith.constant 0.000000e+00 : f32
    %82 = vector.broadcast %cst_29 : f32 to vector<64x128xf32>
    %83 = arith.cmpf oge, %81, %82 : vector<64x128xf32>
    %cst_30 = arith.constant 2.000000e-01 : f32
    %84 = vector.broadcast %cst_30 : f32 to vector<64x128xf32>
    %85 = arith.mulf %84, %81 : vector<64x128xf32>
    %86 = arith.select %83, %81, %85 : vector<64x128xi1>, vector<64x128xf32>
    %cst_31 = arith.constant -1.000000e+30 : f32
    %87 = vector.broadcast %cst_31 : f32 to vector<64x128xf32>
    %88 = arith.select %44, %86, %87 : vector<64x128xi1>, vector<64x128xf32>
    %cst_32 = arith.constant dense<0xFF800000> : vector<64xf32>
    %89 = vector.multi_reduction <maximumf>, %88, %cst_32 [1] : vector<64x128xf32> to vector<64xf32>
    %90 = vector.shape_cast %89 : vector<64xf32> to vector<64x1xf32>
    %91 = vector.broadcast %90 : vector<64x1xf32> to vector<64x128xf32>
    %92 = arith.subf %88, %91 : vector<64x128xf32>
    %93 = math.exp %92 : vector<64x128xf32>
    %cst_33 = arith.constant 0.000000e+00 : f32
    %94 = vector.broadcast %cst_33 : f32 to vector<64x128xf32>
    %95 = arith.select %44, %93, %94 : vector<64x128xi1>, vector<64x128xf32>
    %cst_34 = arith.constant dense<0.000000e+00> : vector<64xf32>
    %96 = vector.multi_reduction <add>, %95, %cst_34 [1] : vector<64x128xf32> to vector<64xf32>
    %97 = vector.shape_cast %96 : vector<64xf32> to vector<64x1xf32>
    %cst_35 = arith.constant 0.000000e+00 : f32
    %98 = vector.broadcast %cst_35 : f32 to vector<64x1xf32>
    %99 = arith.cmpf ogt, %97, %98 : vector<64x1xf32>
    %cst_36 = arith.constant 1.000000e+00 : f32
    %100 = vector.broadcast %cst_36 : f32 to vector<64x1xf32>
    %101 = arith.select %99, %97, %100 : vector<64x1xi1>, vector<64x1xf32>
    %102 = tpu.reciprocal %101 {approx = true} : vector<64x1xf32> -> vector<64x1xf32>
    %103 = vector.broadcast %102 : vector<64x1xf32> to vector<64x128xf32>
    %104 = arith.mulf %95, %103 : vector<64x128xf32>
    %105 = arith.truncf %104 : vector<64x128xf32> to vector<64x128xbf16>
    %cst_37 = arith.constant dense<0.000000e+00> : vector<64x128xf32>
    %106 = tpu.matmul %105, %78, %cst_37 {dimension_numbers = #tpu.dot_dimension_numbers<[1], [0], [0], [1], [0, 0, 1, 1], [], []>} : vector<64x128xbf16>, vector<128x128xbf16>, vector<64x128xf32> -> vector<64x128xf32>
    %cst_38 = arith.constant 5.000000e-01 : f32
    %107 = vector.broadcast %cst_38 : f32 to vector<64x128xf32>
    %108 = arith.mulf %107, %0 : vector<64x128xf32>
    %cst_39 = arith.constant 5.000000e-01 : f32
    %109 = vector.broadcast %cst_39 : f32 to vector<64x128xf32>
    %110 = arith.mulf %109, %106 : vector<64x128xf32>
    %111 = arith.addf %108, %110 : vector<64x128xf32>
    %c0_40 = arith.constant 0 : index
    %c0_41 = arith.constant 0 : index
    %112 = vector.load %arg5[%c0_40, %c0_41] : memref<64x128xf32, #tpu.memory_space<vmem>>, vector<64x128xf32>
    tpu.vector_store %arg5[%c0_40, %c0_41], %111 {strides = array<i32>} : memref<64x128xf32, #tpu.memory_space<vmem>>, vector<64x128xf32>,
    return
  }
}

</mosaic_0001>

<llo_original>
// kernel: intent_graph.1
$region0: #{intent_graph.1}
  #allocation0 [shape = 'u32[]', space=smem, size = 0x4, offset = 0x4, fixed_abs, tag = 'smem constant byte address 0x4 - core index']
  #allocation1 [shape = 'u32[72,128]{1,0:T(1,128)}', space=vmem, size = 0x9000, scoped, tag = 'internal scratch']
  %s0 = inlined_call_operand.vmem [shape: f32[64,128], index: 0, kind: input, shape index: {}]
  %s1 = inlined_call_operand.vmem [shape: bf16[128,128], index: 1, kind: input, shape index: {}]
  %s2 = inlined_call_operand.vmem [shape: bf16[128,128], index: 2, kind: input, shape index: {}]
  %s3 = inlined_call_operand.vmem [shape: f32[1,128], index: 3, kind: input, shape index: {}]
  %s4 = inlined_call_operand.vmem [shape: f32[1,128], index: 4, kind: input, shape index: {}]
  %s5 = inlined_call_operand.vmem [shape: f32[64,128], index: 5, kind: output, shape index: {}]
  %s6 = sld [smem:[#allocation0]]
  $region30: #{intent_graph.1} parent=0
    _
  %s8 = ssub.s32 1, %s6
  %s9 = scalar_select 0, %s8, %s6
  // Predicated region
  $region2: #{intent_graph.1} parent=0 // pred_check
    _
  $region3: #{intent_graph.1} parent=0 // pred_check_branch
    %11 = sbr.rel (0) target = $region5
  $region4: #{intent_graph.1} parent=0 // pred_region
    _
  $region5: #{intent_graph.1} parent=0 // pred_fallthru
    _
  // Predicated region
  $region6: #{intent_graph.1} parent=0 // pred_check
    _
  $region7: #{intent_graph.1} parent=0 // pred_check_branch
    %13 = sbr.rel (0) target = $region9
  $region8: #{intent_graph.1} parent=0 // pred_region
    _
  $region9: #{intent_graph.1} parent=0 // pred_fallthru
    _
  // Predicated region
  $region10: #{intent_graph.1} parent=0 // pred_check
    _
  $region11: #{intent_graph.1} parent=0 // pred_check_branch
    %15 = sbr.rel (0) target = $region13
  $region12: #{intent_graph.1} parent=0 // pred_region
    _
  $region13: #{intent_graph.1} parent=0 // pred_fallthru
    _
  // Predicated region
  $region14: #{intent_graph.1} parent=0 // pred_check
    _
  $region15: #{intent_graph.1} parent=0 // pred_check_branch
    %17 = sbr.rel (0) target = $region17
  $region16: #{intent_graph.1} parent=0 // pred_region
    _
  $region17: #{intent_graph.1} parent=0 // pred_fallthru
    _
  // Predicated region
  $region18: #{intent_graph.1} parent=0 // pred_check
    _
  $region19: #{intent_graph.1} parent=0 // pred_check_branch
    %19 = sbr.rel (0) target = $region21
  $region20: #{intent_graph.1} parent=0 // pred_region
    _
  $region21: #{intent_graph.1} parent=0 // pred_fallthru
    _
  %v21 = vld [vmem:[%s0] sm:$0xff]
  %v22 = vld [vmem:[%s0 + $0x8] sm:$0xff]
  %v23 = vld [vmem:[%s0 + $0x10] sm:$0xff]
  %v24 = vld [vmem:[%s0 + $0x18] sm:$0xff]
  %v25 = vld [vmem:[%s0 + $0x20] sm:$0xff]
  %v26 = vld [vmem:[%s0 + $0x28] sm:$0xff]
  %v27 = vld [vmem:[%s0 + $0x30] sm:$0xff]
  %v28 = vld [vmem:[%s0 + $0x38] sm:$0xff]
  %v29 = vpack.c.bf16 %v21, %v21
  %v30 = vpack.c.bf16 %v22, %v22
  %v31 = vpack.c.bf16 %v23, %v23
  %v32 = vpack.c.bf16 %v24, %v24
  %v33 = vpack.c.bf16 %v25, %v25
  %v34 = vpack.c.bf16 %v26, %v26
  %v35 = vpack.c.bf16 %v27, %v27
  %v36 = vpack.c.bf16 %v28, %v28
  %v37 = vld [vmem:[%s1] sm:$0xf]
  %v38 = vld [vmem:[%s1 + $0x4] sm:$0xf]
  %v39 = vld [vmem:[%s1 + $0x8] sm:$0xf]
  %v40 = vld [vmem:[%s1 + $0xc] sm:$0xf]
  %v41 = vld [vmem:[%s1 + $0x10] sm:$0xf]
  %v42 = vld [vmem:[%s1 + $0x14] sm:$0xf]
  %v43 = vld [vmem:[%s1 + $0x18] sm:$0xf]
  %v44 = vld [vmem:[%s1 + $0x1c] sm:$0xf]
  %v45 = vld [vmem:[%s1 + $0x20] sm:$0xf]
  %v46 = vld [vmem:[%s1 + $0x24] sm:$0xf]
  %v47 = vld [vmem:[%s1 + $0x28] sm:$0xf]
  %v48 = vld [vmem:[%s1 + $0x2c] sm:$0xf]
  %v49 = vld [vmem:[%s1 + $0x30] sm:$0xf]
  %v50 = vld [vmem:[%s1 + $0x34] sm:$0xf]
  %v51 = vld [vmem:[%s1 + $0x38] sm:$0xf]
  %v52 = vld [vmem:[%s1 + $0x3c] sm:$0xf]
  %v53 = vld [vmem:[%s2] sm:$0xf]
  %v54 = vld [vmem:[%s2 + $0x4] sm:$0xf]
  %v55 = vld [vmem:[%s2 + $0x8] sm:$0xf]
  %v56 = vld [vmem:[%s2 + $0xc] sm:$0xf]
  %v57 = vld [vmem:[%s2 + $0x10] sm:$0xf]
  %v58 = vld [vmem:[%s2 + $0x14] sm:$0xf]
  %v59 = vld [vmem:[%s2 + $0x18] sm:$0xf]
  %v60 = vld [vmem:[%s2 + $0x1c] sm:$0xf]
  %v61 = vld [vmem:[%s2 + $0x20] sm:$0xf]
  %v62 = vld [vmem:[%s2 + $0x24] sm:$0xf]
  %v63 = vld [vmem:[%s2 + $0x28] sm:$0xf]
  %v64 = vld [vmem:[%s2 + $0x2c] sm:$0xf]
  %v65 = vld [vmem:[%s2 + $0x30] sm:$0xf]
  %v66 = vld [vmem:[%s2 + $0x34] sm:$0xf]
  %v67 = vld [vmem:[%s2 + $0x38] sm:$0xf]
  %v68 = vld [vmem:[%s2 + $0x3c] sm:$0xf]
  %v69 = vld [vmem:[%s3] sm:$0x1]
  %v70 = vpack.c.bf16 %v69, %v69
  %v71 = vld [vmem:[%s4] sm:$0x1]
  %v72 = vpack.c.bf16 %v71, %v71
  %v81 = vunpack.c.l.b16 %v29
  %v82 = vunpack.c.l.b16 %v30
  %v83 = vunpack.c.l.b16 %v31
  %v84 = vunpack.c.l.b16 %v32
  %v85 = vunpack.c.l.b16 %v33
  %v86 = vunpack.c.l.b16 %v34
  %v87 = vunpack.c.l.b16 %v35
  %v88 = vunpack.c.l.b16 %v36
  %v89 = vpack.c.b16 %v82, %v81
  %v90 = vpack.c.b16 %v84, %v83
  %v91 = vpack.c.b16 %v86, %v85
  %v92 = vpack.c.b16 %v88, %v87
  %v113 = vunpack.c.l.b16 %v53
  %v114 = vunpack.c.l.b16 %v54
  %v115 = vunpack.c.l.b16 %v55
  %v116 = vunpack.c.l.b16 %v56
  %v117 = vunpack.c.l.b16 %v57
  %v118 = vunpack.c.l.b16 %v58
  %v119 = vunpack.c.l.b16 %v59
  %v120 = vunpack.c.l.b16 %v60
  %v121 = vunpack.c.l.b16 %v61
  %v122 = vunpack.c.l.b16 %v62
  %v123 = vunpack.c.l.b16 %v63
  %v124 = vunpack.c.l.b16 %v64
  %v125 = vunpack.c.l.b16 %v65
  %v126 = vunpack.c.l.b16 %v66
  %v127 = vunpack.c.l.b16 %v67
  %v128 = vunpack.c.l.b16 %v68
  %v129 = vpack.c.b16 %v114, %v113
  %v130 = vpack.c.b16 %v116, %v115
  %v131 = vpack.c.b16 %v118, %v117
  %v132 = vpack.c.b16 %v120, %v119
  %v133 = vpack.c.b16 %v122, %v121
  %v134 = vpack.c.b16 %v124, %v123
  %v135 = vpack.c.b16 %v126, %v125
  %v136 = vpack.c.b16 %v128, %v127
  %145 = vmatpush.bf16.msra.mxu0 %v136
  %146 = vmatpush.bf16.msra.mxu0 %v135
  %147 = vmatpush.bf16.msra.mxu0 %v134
  %148 = vmatpush.bf16.msra.mxu0 %v133
  %149 = vmatpush.bf16.msra.mxu0 %v132
  %150 = vmatpush.bf16.msra.mxu0 %v131
  %151 = vmatpush.bf16.msra.mxu0 %v130
  %152 = vmatpush.bf16.msra.mxu0 %v129
  %153 = vmatmul.bf16.gmra.mxu0 %v89
  %v154 = vpop.f32.mrf.mxu0
  %v155 = vadd.f32 0.0, %v154
  %v156 = vpop.f32.mrf.mxu0
  %v157 = vadd.f32 0.0, %v156
  %158 = vmatmul.bf16.gmra.mxu0 %v90
  %v159 = vpop.f32.mrf.mxu0
  %v160 = vadd.f32 0.0, %v159
  %v161 = vpop.f32.mrf.mxu0
  %v162 = vadd.f32 0.0, %v161
  %163 = vmatmul.bf16.gmra.mxu0 %v91
  %v164 = vpop.f32.mrf.mxu0
  %v165 = vadd.f32 0.0, %v164
  %v166 = vpop.f32.mrf.mxu0
  %v167 = vadd.f32 0.0, %v166
  %168 = vmatmul.bf16.gmra.mxu0 %v92
  %v169 = vpop.f32.mrf.mxu0
  %v170 = vadd.f32 0.0, %v169
  %v171 = vpop.f32.mrf.mxu0
  %v172 = vadd.f32 0.0, %v171
  %173 = vdwg.mxu0
  %v174 = vpack.c.bf16 %v157, %v155
  %v175 = vpack.c.bf16 %v162, %v160
  %v176 = vpack.c.bf16 %v167, %v165
  %v177 = vpack.c.bf16 %v172, %v170
  %v194 = vunpack.c.l.b16 %v37
  %v195 = vunpack.c.l.b16 %v38
  %v196 = vunpack.c.l.b16 %v39
  %v197 = vunpack.c.l.b16 %v40
  %v198 = vunpack.c.l.b16 %v41
  %v199 = vunpack.c.l.b16 %v42
  %v200 = vunpack.c.l.b16 %v43
  %v201 = vunpack.c.l.b16 %v44
  %v202 = vunpack.c.l.b16 %v45
  %v203 = vunpack.c.l.b16 %v46
  %v204 = vunpack.c.l.b16 %v47
  %v205 = vunpack.c.l.b16 %v48
  %v206 = vunpack.c.l.b16 %v49
  %v207 = vunpack.c.l.b16 %v50
  %v208 = vunpack.c.l.b16 %v51
  %v209 = vunpack.c.l.b16 %v52
  %v210 = vpack.c.b16 %v195, %v194
  %v211 = vpack.c.b16 %v197, %v196
  %v212 = vpack.c.b16 %v199, %v198
  %v213 = vpack.c.b16 %v201, %v200
  %v214 = vpack.c.b16 %v203, %v202
  %v215 = vpack.c.b16 %v205, %v204
  %v216 = vpack.c.b16 %v207, %v206
  %v217 = vpack.c.b16 %v209, %v208
  %226 = vmatpush.bf16.xpose.msra.mxu0 %v217
  %227 = vmatpush.bf16.xpose.msra.mxu0 %v216
  %228 = vmatpush.bf16.xpose.msra.mxu0 %v215
  %229 = vmatpush.bf16.xpose.msra.mxu0 %v214
  %230 = vmatpush.bf16.xpose.msra.mxu0 %v213
  %231 = vmatpush.bf16.xpose.msra.mxu0 %v212
  %232 = vmatpush.bf16.xpose.msra.mxu0 %v211
  %233 = vmatpush.bf16.xpose.msra.mxu0 %v210
  %234 = vmatmul.bf16.gmra.mxu0 %v174
  %v235 = vpop.f32.mrf.mxu0
  %v236 = vadd.f32 0.0, %v235
  %v237 = vpop.f32.mrf.mxu0
  %v238 = vadd.f32 0.0, %v237
  %239 = vmatmul.bf16.gmra.mxu0 %v175
  %v240 = vpop.f32.mrf.mxu0
  %v241 = vadd.f32 0.0, %v240
  %v242 = vpop.f32.mrf.mxu0
  %v243 = vadd.f32 0.0, %v242
  %244 = vmatmul.bf16.gmra.mxu0 %v176
  %v245 = vpop.f32.mrf.mxu0
  %v246 = vadd.f32 0.0, %v245
  %v247 = vpop.f32.mrf.mxu0
  %v248 = vadd.f32 0.0, %v247
  %249 = vmatmul.bf16.gmra.mxu0 %v177
  %v250 = vpop.f32.mrf.mxu0
  %v251 = vadd.f32 0.0, %v250
  %v252 = vpop.f32.mrf.mxu0
  %v253 = vadd.f32 0.0, %v252
  %254 = vdwg.mxu0
  %v255 = vlaneseq
  %v256 = vand.u32 %v255, 127
  %vm257 = vcmp.lt.s32.totalorder %v256, 16
  %v258 = vlaneseq
  %v259 = vshrl.u32 %v258, 7
  %v260 = vadd.s32 %v259, 8
  %v261 = vadd.s32 %v259, 16
  %v262 = vadd.s32 %v259, 24
  %v263 = vadd.s32 %v259, 32
  %v264 = vadd.s32 %v259, 40
  %v265 = vadd.s32 %v259, 48
  %v266 = vadd.s32 %v259, 56
  %vm267 = vcmp.lt.s32.totalorder %v259, 64
  %vm268 = vcmp.lt.s32.totalorder %v260, 64
  %vm269 = vcmp.lt.s32.totalorder %v261, 64
  %vm270 = vcmp.lt.s32.totalorder %v262, 64
  %vm271 = vcmp.lt.s32.totalorder %v263, 64
  %vm272 = vcmp.lt.s32.totalorder %v264, 64
  %vm273 = vcmp.lt.s32.totalorder %v265, 64
  %vm274 = vcmp.lt.s32.totalorder %v266, 64
  %v275 = vcvt.s32.f32 %v256
  %v276 = vmul.f32 %v275, 1e-06
  %v277 = vsub.f32 %v236, %v276
  %v278 = vsub.f32 %v238, %v276
  %v279 = vsub.f32 %v241, %v276
  %v280 = vsub.f32 %v243, %v276
  %v281 = vsub.f32 %v246, %v276
  %v282 = vsub.f32 %v248, %v276
  %v283 = vsub.f32 %v251, %v276
  %v284 = vsub.f32 %v253, %v276
  %v285 = vsel %vm257, %v277, -1e+30
  %v286 = vsel %vm257, %v278, -1e+30
  %v287 = vsel %vm257, %v279, -1e+30
  %v288 = vsel %vm257, %v280, -1e+30
  %v289 = vsel %vm257, %v281, -1e+30
  %v290 = vsel %vm257, %v282, -1e+30
  %v291 = vsel %vm257, %v283, -1e+30
  %v292 = vsel %vm257, %v284, -1e+30
  %293 = vmax.xlane.f32.xlu0 %v285
  %v294 = vpop.xlane.xlu0 %293
  %295 = vmax.xlane.f32.xlu0 %v286
  %v296 = vpop.xlane.xlu0 %295
  %297 = vmax.xlane.f32.xlu0 %v287
  %v298 = vpop.xlane.xlu0 %297
  %299 = vmax.xlane.f32.xlu0 %v288
  %v300 = vpop.xlane.xlu0 %299
  %301 = vmax.xlane.f32.xlu0 %v289
  %v302 = vpop.xlane.xlu0 %301
  %303 = vmax.xlane.f32.xlu0 %v290
  %v304 = vpop.xlane.xlu0 %303
  %305 = vmax.xlane.f32.xlu0 %v291
  %v306 = vpop.xlane.xlu0 %305
  %307 = vmax.xlane.f32.xlu0 %v292
  %v308 = vpop.xlane.xlu0 %307
  %vm309 = vcmp.eq.f32.partialorder %v285, %v294
  %vm310 = vcmp.eq.f32.partialorder %v286, %v296
  %vm311 = vcmp.eq.f32.partialorder %v287, %v298
  %vm312 = vcmp.eq.f32.partialorder %v288, %v300
  %vm313 = vcmp.eq.f32.partialorder %v289, %v302
  %vm314 = vcmp.eq.f32.partialorder %v290, %v304
  %vm315 = vcmp.eq.f32.partialorder %v291, %v306
  %vm316 = vcmp.eq.f32.partialorder %v292, %v308
  %v317 = vsel %vm309, -1e+30, %v285
  %v318 = vsel %vm310, -1e+30, %v286
  %v319 = vsel %vm311, -1e+30, %v287
  %v320 = vsel %vm312, -1e+30, %v288
  %v321 = vsel %vm313, -1e+30, %v289
  %v322 = vsel %vm314, -1e+30, %v290
  %v323 = vsel %vm315, -1e+30, %v291
  %v324 = vsel %vm316, -1e+30, %v292
  %325 = vmax.xlane.f32.xlu0 %v317
  %v326 = vpop.xlane.xlu0 %325
  %327 = vmax.xlane.f32.xlu0 %v318
  %v328 = vpop.xlane.xlu0 %327
  %329 = vmax.xlane.f32.xlu0 %v319
  %v330 = vpop.xlane.xlu0 %329
  %331 = vmax.xlane.f32.xlu0 %v320
  %v332 = vpop.xlane.xlu0 %331
  %333 = vmax.xlane.f32.xlu0 %v321
  %v334 = vpop.xlane.xlu0 %333
  %335 = vmax.xlane.f32.xlu0 %v322
  %v336 = vpop.xlane.xlu0 %335
  %337 = vmax.xlane.f32.xlu0 %v323
  %v338 = vpop.xlane.xlu0 %337
  %339 = vmax.xlane.f32.xlu0 %v324
  %v340 = vpop.xlane.xlu0 %339
  %vm341 = vcmp.eq.f32.partialorder %v317, %v326
  %vm342 = vcmp.eq.f32.partialorder %v318, %v328
  %vm343 = vcmp.eq.f32.partialorder %v319, %v330
  %vm344 = vcmp.eq.f32.partialorder %v320, %v332
  %vm345 = vcmp.eq.f32.partialorder %v321, %v334
  %vm346 = vcmp.eq.f32.partialorder %v322, %v336
  %vm347 = vcmp.eq.f32.partialorder %v323, %v338
  %vm348 = vcmp.eq.f32.partialorder %v324, %v340
  %vm349 = vmor %vm309, %vm341
  %vm350 = vmor %vm310, %vm342
  %vm351 = vmor %vm311, %vm343
  %vm352 = vmor %vm312, %vm344
  %vm353 = vmor %vm313, %vm345
  %vm354 = vmor %vm314, %vm346
  %vm355 = vmor %vm315, %vm347
  %vm356 = vmor %vm316, %vm348
  %v357 = vsel %vm341, -1e+30, %v317
  %v358 = vsel %vm342, -1e+30, %v318
  %v359 = vsel %vm343, -1e+30, %v319
  %v360 = vsel %vm344, -1e+30, %v320
  %v361 = vsel %vm345, -1e+30, %v321
  %v362 = vsel %vm346, -1e+30, %v322
  %v363 = vsel %vm347, -1e+30, %v323
  %v364 = vsel %vm348, -1e+30, %v324
  %365 = vmax.xlane.f32.xlu0 %v357
  %v366 = vpop.xlane.xlu0 %365
  %367 = vmax.xlane.f32.xlu0 %v358
  %v368 = vpop.xlane.xlu0 %367
  %369 = vmax.xlane.f32.xlu0 %v359
  %v370 = vpop.xlane.xlu0 %369
  %371 = vmax.xlane.f32.xlu0 %v360
  %v372 = vpop.xlane.xlu0 %371
  %373 = vmax.xlane.f32.xlu0 %v361
  %v374 = vpop.xlane.xlu0 %373
  %375 = vmax.xlane.f32.xlu0 %v362
  %v376 = vpop.xlane.xlu0 %375
  %377 = vmax.xlane.f32.xlu0 %v363
  %v378 = vpop.xlane.xlu0 %377
  %379 = vmax.xlane.f32.xlu0 %v364
  %v380 = vpop.xlane.xlu0 %379
  %vm381 = vcmp.eq.f32.partialorder %v357, %v366
  %vm382 = vcmp.eq.f32.partialorder %v358, %v368
  %vm383 = vcmp.eq.f32.partialorder %v359, %v370
  %vm384 = vcmp.eq.f32.partialorder %v360, %v372
  %vm385 = vcmp.eq.f32.partialorder %v361, %v374
  %vm386 = vcmp.eq.f32.partialorder %v362, %v376
  %vm387 = vcmp.eq.f32.partialorder %v363, %v378
  %vm388 = vcmp.eq.f32.partialorder %v364, %v380
  %vm389 = vmor %vm349, %vm381
  %vm390 = vmor %vm350, %vm382
  %vm391 = vmor %vm351, %vm383
  %vm392 = vmor %vm352, %vm384
  %vm393 = vmor %vm353, %vm385
  %vm394 = vmor %vm354, %vm386
  %vm395 = vmor %vm355, %vm387
  %vm396 = vmor %vm356, %vm388
  %v397 = vsel %vm267, 1, 0
  %v398 = vsel %vm268, 1, 0
  %v399 = vsel %vm269, 1, 0
  %v400 = vsel %vm270, 1, 0
  %v401 = vsel %vm271, 1, 0
  %v402 = vsel %vm272, 1, 0
  %v403 = vsel %vm273, 1, 0
  %v404 = vsel %vm274, 1, 0
  %vm405 = vcmp.eq.s32.totalorder %v397, 1
  %vm406 = vcmp.eq.s32.totalorder %v398, 1
  %vm407 = vcmp.eq.s32.totalorder %v399, 1
  %vm408 = vcmp.eq.s32.totalorder %v400, 1
  %vm409 = vcmp.eq.s32.totalorder %v401, 1
  %vm410 = vcmp.eq.s32.totalorder %v402, 1
  %vm411 = vcmp.eq.s32.totalorder %v403, 1
  %vm412 = vcmp.eq.s32.totalorder %v404, 1
  %vm413 = vmand %vm389, %vm405
  %vm414 = vmand %vm390, %vm406
  %vm415 = vmand %vm391, %vm407
  %vm416 = vmand %vm392, %vm408
  %vm417 = vmand %vm393, %vm409
  %vm418 = vmand %vm394, %vm410
  %vm419 = vmand %vm395, %vm411
  %vm420 = vmand %vm396, %vm412
  %v421 = vsel %vm413, 1, 0
  %v422 = vsel %vm414, 1, 0
  %v423 = vsel %vm415, 1, 0
  %v424 = vsel %vm416, 1, 0
  %v425 = vsel %vm417, 1, 0
  %v426 = vsel %vm418, 1, 0
  %v427 = vsel %vm419, 1, 0
  %v428 = vsel %vm420, 1, 0
  %v429 = vcvt.s32.f32 %v421
  %v430 = vcvt.s32.f32 %v422
  %v431 = vcvt.s32.f32 %v423
  %v432 = vcvt.s32.f32 %v424
  %v433 = vcvt.s32.f32 %v425
  %v434 = vcvt.s32.f32 %v426
  %v435 = vcvt.s32.f32 %v427
  %v436 = vcvt.s32.f32 %v428
  %437 = vxpose.xlu0.b32.start [1/16] %v429, 128
  %438 = vxpose.xlu0.b32.cont [2/16] %v430, 128
  %439 = vxpose.xlu0.b32.cont [3/16] %v431, 128
  %440 = vxpose.xlu0.b32.cont [4/16] %v432, 128
  %441 = vxpose.xlu0.b32.cont [5/16] %v433, 128
  %442 = vxpose.xlu0.b32.cont [6/16] %v434, 128
  %443 = vxpose.xlu0.b32.cont [7/16] %v435, 128
  %444 = vxpose.xlu0.b32.cont [8/16] %v436, 128
  %445 = vxpose.xlu0.b32.cont [9/16] 0.0, 128
  %446 = vxpose.xlu0.b32.cont [10/16] 0.0, 128
  %447 = vxpose.xlu0.b32.cont [11/16] 0.0, 128
  %448 = vxpose.xlu0.b32.cont [12/16] 0.0, 128
  %449 = vxpose.xlu0.b32.cont [13/16] 0.0, 128
  %450 = vxpose.xlu0.b32.cont [14/16] 0.0, 128
  %451 = vxpose.xlu0.b32.cont [15/16] 0.0, 128
  %452 = vxpose.xlu0.b32.end [16/16] 0.0, 128
  %v453 = vpop.trf.xlu0
  %v454 = vpop.trf.xlu0
  %v455 = vpop.trf.xlu0
  %v456 = vpop.trf.xlu0
  %v457 = vpop.trf.xlu0
  %v458 = vpop.trf.xlu0
  %v459 = vpop.trf.xlu0
  %v460 = vpop.trf.xlu0
  %v461 = vpop.trf.xlu0
  %v462 = vpop.trf.xlu0
  %v463 = vpop.trf.xlu0
  %v464 = vpop.trf.xlu0
  %v465 = vpop.trf.xlu0
  %v466 = vpop.trf.xlu0
  %v467 = vpop.trf.xlu0
  %v468 = vpop.trf.xlu0
  %vm469 = vcmp.gt.f32.partialorder %v453, 0.0
  %vm470 = vcmp.gt.f32.partialorder %v454, 0.0
  %vm471 = vcmp.gt.f32.partialorder %v455, 0.0
  %vm472 = vcmp.gt.f32.partialorder %v456, 0.0
  %vm473 = vcmp.gt.f32.partialorder %v457, 0.0
  %vm474 = vcmp.gt.f32.partialorder %v458, 0.0
  %vm475 = vcmp.gt.f32.partialorder %v459, 0.0
  %vm476 = vcmp.gt.f32.partialorder %v460, 0.0
  %vm477 = vcmp.gt.f32.partialorder %v461, 0.0
  %vm478 = vcmp.gt.f32.partialorder %v462, 0.0
  %vm479 = vcmp.gt.f32.partialorder %v463, 0.0
  %vm480 = vcmp.gt.f32.partialorder %v464, 0.0
  %vm481 = vcmp.gt.f32.partialorder %v465, 0.0
  %vm482 = vcmp.gt.f32.partialorder %v466, 0.0
  %vm483 = vcmp.gt.f32.partialorder %v467, 0.0
  %vm484 = vcmp.gt.f32.partialorder %v468, 0.0
  %v486 = vpack.i.b16 %v70, %v70
  %v488 = vperm.slane %v486, 0
  %v489 = vunpack.c.l.bf16 %v37
  %v490 = vunpack.c.l.bf16 %v38
  %v491 = vunpack.c.l.bf16 %v39
  %v492 = vunpack.c.l.bf16 %v40
  %v493 = vunpack.c.l.bf16 %v41
  %v494 = vunpack.c.l.bf16 %v42
  %v495 = vunpack.c.l.bf16 %v43
  %v496 = vunpack.c.l.bf16 %v44
  %v497 = vunpack.c.l.bf16 %v45
  %v498 = vunpack.c.l.bf16 %v46
  %v499 = vunpack.c.l.bf16 %v47
  %v500 = vunpack.c.l.bf16 %v48
  %v501 = vunpack.c.l.bf16 %v49
  %v502 = vunpack.c.l.bf16 %v50
  %v503 = vunpack.c.l.bf16 %v51
  %v504 = vunpack.c.l.bf16 %v52
  %v505 = vunpack.c.l.bf16 %v488
  %v506 = vmul.f32 %v489, %v505
  %v507 = vmul.f32 %v490, %v505
  %v508 = vmul.f32 %v491, %v505
  %v509 = vmul.f32 %v492, %v505
  %v510 = vmul.f32 %v493, %v505
  %v511 = vmul.f32 %v494, %v505
  %v512 = vmul.f32 %v495, %v505
  %v513 = vmul.f32 %v496, %v505
  %v514 = vmul.f32 %v497, %v505
  %v515 = vmul.f32 %v498, %v505
  %v516 = vmul.f32 %v499, %v505
  %v517 = vmul.f32 %v500, %v505
  %v518 = vmul.f32 %v501, %v505
  %v519 = vmul.f32 %v502, %v505
  %v520 = vmul.f32 %v503, %v505
  %v521 = vmul.f32 %v504, %v505
  %v522 = vpack.c.bf16 %v507, %v506
  %v523 = vpack.c.bf16 %v509, %v508
  %v524 = vpack.c.bf16 %v511, %v510
  %v525 = vpack.c.bf16 %v513, %v512
  %v526 = vpack.c.bf16 %v515, %v514
  %v527 = vpack.c.bf16 %v517, %v516
  %v528 = vpack.c.bf16 %v519, %v518
  %v529 = vpack.c.bf16 %v521, %v520
  %530 = vmatpush.bf16.xpose.msra.mxu0 0
  %531 = vmatpush.bf16.xpose.msra.mxu0 0
  %532 = vmatpush.bf16.xpose.msra.mxu0 0
  %533 = vmatpush.bf16.xpose.msra.mxu0 0
  %534 = vmatpush.bf16.xpose.msra.mxu0 %v92
  %535 = vmatpush.bf16.xpose.msra.mxu0 %v91
  %536 = vmatpush.bf16.xpose.msra.mxu0 %v90
  %537 = vmatpush.bf16.xpose.msra.mxu0 %v89
  %538 = vmatmul.bf16.gmra.mxu0 %v522
  %v539 = vpop.f32.mrf.mxu0
  %v540 = vadd.f32 0.0, %v539
  %v541 = vpop.f32.mrf.mxu0
  %v542 = vadd.f32 0.0, %v541
  %543 = vmatmul.bf16.gmra.mxu0 %v523
  %v544 = vpop.f32.mrf.mxu0
  %v545 = vadd.f32 0.0, %v544
  %v546 = vpop.f32.mrf.mxu0
  %v547 = vadd.f32 0.0, %v546
  %548 = vmatmul.bf16.gmra.mxu0 %v524
  %v549 = vpop.f32.mrf.mxu0
  %v550 = vadd.f32 0.0, %v549
  %v551 = vpop.f32.mrf.mxu0
  %v552 = vadd.f32 0.0, %v551
  %553 = vmatmul.bf16.gmra.mxu0 %v525
  %v554 = vpop.f32.mrf.mxu0
  %v555 = vadd.f32 0.0, %v554
  %v556 = vpop.f32.mrf.mxu0
  %v557 = vadd.f32 0.0, %v556
  %558 = vmatmul.bf16.gmra.mxu0 %v526
  %v559 = vpop.f32.mrf.mxu0
  %v560 = vadd.f32 0.0, %v559
  %v561 = vpop.f32.mrf.mxu0
  %v562 = vadd.f32 0.0, %v561
  %563 = vmatmul.bf16.gmra.mxu0 %v527
  %v564 = vpop.f32.mrf.mxu0
  %v565 = vadd.f32 0.0, %v564
  %v566 = vpop.f32.mrf.mxu0
  %v567 = vadd.f32 0.0, %v566
  %568 = vmatmul.bf16.gmra.mxu0 %v528
  %v569 = vpop.f32.mrf.mxu0
  %v570 = vadd.f32 0.0, %v569
  %v571 = vpop.f32.mrf.mxu0
  %v572 = vadd.f32 0.0, %v571
  %573 = vmatmul.bf16.gmra.mxu0 %v529
  %v574 = vpop.f32.mrf.mxu0
  %v575 = vadd.f32 0.0, %v574
  %v576 = vpop.f32.mrf.mxu0
  %v577 = vadd.f32 0.0, %v576
  %578 = vdwg.mxu0
  %vm579 = vcmp.ge.f32.partialorder %v540, 0.0
  %vm580 = vcmp.ge.f32.partialorder %v542, 0.0
  %vm581 = vcmp.ge.f32.partialorder %v545, 0.0
  %vm582 = vcmp.ge.f32.partialorder %v547, 0.0
  %vm583 = vcmp.ge.f32.partialorder %v550, 0.0
  %vm584 = vcmp.ge.f32.partialorder %v552, 0.0
  %vm585 = vcmp.ge.f32.partialorder %v555, 0.0
  %vm586 = vcmp.ge.f32.partialorder %v557, 0.0
  %vm587 = vcmp.ge.f32.partialorder %v560, 0.0
  %vm588 = vcmp.ge.f32.partialorder %v562, 0.0
  %vm589 = vcmp.ge.f32.partialorder %v565, 0.0
  %vm590 = vcmp.ge.f32.partialorder %v567, 0.0
  %vm591 = vcmp.ge.f32.partialorder %v570, 0.0
  %vm592 = vcmp.ge.f32.partialorder %v572, 0.0
  %vm593 = vcmp.ge.f32.partialorder %v575, 0.0
  %vm594 = vcmp.ge.f32.partialorder %v577, 0.0
  %v595 = vmul.f32 %v540, 0.2
  %v596 = vmul.f32 %v542, 0.2
  %v597 = vmul.f32 %v545, 0.2
  %v598 = vmul.f32 %v547, 0.2
  %v599 = vmul.f32 %v550, 0.2
  %v600 = vmul.f32 %v552, 0.2
  %v601 = vmul.f32 %v555, 0.2
  %v602 = vmul.f32 %v557, 0.2
  %v603 = vmul.f32 %v560, 0.2
  %v604 = vmul.f32 %v562, 0.2
  %v605 = vmul.f32 %v565, 0.2
  %v606 = vmul.f32 %v567, 0.2
  %v607 = vmul.f32 %v570, 0.2
  %v608 = vmul.f32 %v572, 0.2
  %v609 = vmul.f32 %v575, 0.2
  %v610 = vmul.f32 %v577, 0.2
  %v611 = vsel %vm579, %v540, %v595
  %v612 = vsel %vm580, %v542, %v596
  %v613 = vsel %vm581, %v545, %v597
  %v614 = vsel %vm582, %v547, %v598
  %v615 = vsel %vm583, %v550, %v599
  %v616 = vsel %vm584, %v552, %v600
  %v617 = vsel %vm585, %v555, %v601
  %v618 = vsel %vm586, %v557, %v602
  %v619 = vsel %vm587, %v560, %v603
  %v620 = vsel %vm588, %v562, %v604
  %v621 = vsel %vm589, %v565, %v605
  %v622 = vsel %vm590, %v567, %v606
  %v623 = vsel %vm591, %v570, %v607
  %v624 = vsel %vm592, %v572, %v608
  %v625 = vsel %vm593, %v575, %v609
  %v626 = vsel %vm594, %v577, %v610
  %v627 = vsel %vm469, %v611, -1e+30
  %v628 = vsel %vm470, %v612, -1e+30
  %v629 = vsel %vm471, %v613, -1e+30
  %v630 = vsel %vm472, %v614, -1e+30
  %v631 = vsel %vm473, %v615, -1e+30
  %v632 = vsel %vm474, %v616, -1e+30
  %v633 = vsel %vm475, %v617, -1e+30
  %v634 = vsel %vm476, %v618, -1e+30
  %v635 = vsel %vm477, %v619, -1e+30
  %v636 = vsel %vm478, %v620, -1e+30
  %v637 = vsel %vm479, %v621, -1e+30
  %v638 = vsel %vm480, %v622, -1e+30
  %v639 = vsel %vm481, %v623, -1e+30
  %v640 = vsel %vm482, %v624, -1e+30
  %v641 = vsel %vm483, %v625, -1e+30
  %v642 = vsel %vm484, %v626, -1e+30
  %vm643 = vcmask 523264
  %v644 = vsel %vm643, %v627, -inf
  %645 = vmax.xlane.f32.xlu0 %v644
  %v646 = vpop.xlane.xlu0 %645
  %v647 = vsel %vm643, %v628, -inf
  %648 = vmax.xlane.f32.xlu0 %v647
  %v649 = vpop.xlane.xlu0 %648
  %v650 = vsel %vm643, %v629, -inf
  %651 = vmax.xlane.f32.xlu0 %v650
  %v652 = vpop.xlane.xlu0 %651
  %v653 = vsel %vm643, %v630, -inf
  %654 = vmax.xlane.f32.xlu0 %v653
  %v655 = vpop.xlane.xlu0 %654
  %v656 = vsel %vm643, %v631, -inf
  %657 = vmax.xlane.f32.xlu0 %v656
  %v658 = vpop.xlane.xlu0 %657
  %v659 = vsel %vm643, %v632, -inf
  %660 = vmax.xlane.f32.xlu0 %v659
  %v661 = vpop.xlane.xlu0 %660
  %v662 = vsel %vm643, %v633, -inf
  %663 = vmax.xlane.f32.xlu0 %v662
  %v664 = vpop.xlane.xlu0 %663
  %v665 = vsel %vm643, %v634, -inf
  %666 = vmax.xlane.f32.xlu0 %v665
  %v667 = vpop.xlane.xlu0 %666
  %v668 = vsel %vm643, %v635, -inf
  %669 = vmax.xlane.f32.xlu0 %v668
  %v670 = vpop.xlane.xlu0 %669
  %v671 = vsel %vm643, %v636, -inf
  %672 = vmax.xlane.f32.xlu0 %v671
  %v673 = vpop.xlane.xlu0 %672
  %v674 = vsel %vm643, %v637, -inf
  %675 = vmax.xlane.f32.xlu0 %v674
  %v676 = vpop.xlane.xlu0 %675
  %v677 = vsel %vm643, %v638, -inf
  %678 = vmax.xlane.f32.xlu0 %v677
  %v679 = vpop.xlane.xlu0 %678
  %v680 = vsel %vm643, %v639, -inf
  %681 = vmax.xlane.f32.xlu0 %v680
  %v682 = vpop.xlane.xlu0 %681
  %v683 = vsel %vm643, %v640, -inf
  %684 = vmax.xlane.f32.xlu0 %v683
  %v685 = vpop.xlane.xlu0 %684
  %v686 = vsel %vm643, %v641, -inf
  %687 = vmax.xlane.f32.xlu0 %v686
  %v688 = vpop.xlane.xlu0 %687
  %v689 = vsel %vm643, %v642, -inf
  %690 = vmax.xlane.f32.xlu0 %v689
  %v691 = vpop.xlane.xlu0 %690
  %v692 = vsub.f32 %v627, %v646
  %v693 = vsub.f32 %v628, %v649
  %v694 = vsub.f32 %v629, %v652
  %v695 = vsub.f32 %v630, %v655
  %v696 = vsub.f32 %v631, %v658
  %v697 = vsub.f32 %v632, %v661
  %v698 = vsub.f32 %v633, %v664
  %v699 = vsub.f32 %v634, %v667
  %v700 = vsub.f32 %v635, %v670
  %v701 = vsub.f32 %v636, %v673
  %v702 = vsub.f32 %v637, %v676
  %v703 = vsub.f32 %v638, %v679
  %v704 = vsub.f32 %v639, %v682
  %v705 = vsub.f32 %v640, %v685
  %v706 = vsub.f32 %v641, %v688
  %v707 = vsub.f32 %v642, %v691
  %v708 = vmul.f32 %v692, 1.442695
  %v709 = vpow.pop %v708
  %v710 = vmul.f32 %v693, 1.442695
  %v711 = vpow.pop %v710
  %v712 = vmul.f32 %v694, 1.442695
  %v713 = vpow.pop %v712
  %v714 = vmul.f32 %v695, 1.442695
  %v715 = vpow.pop %v714
  %v716 = vmul.f32 %v696, 1.442695
  %v717 = vpow.pop %v716
  %v718 = vmul.f32 %v697, 1.442695
  %v719 = vpow.pop %v718
  %v720 = vmul.f32 %v698, 1.442695
  %v721 = vpow.pop %v720
  %v722 = vmul.f32 %v699, 1.442695
  %v723 = vpow.pop %v722
  %v724 = vmul.f32 %v700, 1.442695
  %v725 = vpow.pop %v724
  %v726 = vmul.f32 %v701, 1.442695
  %v727 = vpow.pop %v726
  %v728 = vmul.f32 %v702, 1.442695
  %v729 = vpow.pop %v728
  %v730 = vmul.f32 %v703, 1.442695
  %v731 = vpow.pop %v730
  %v732 = vmul.f32 %v704, 1.442695
  %v733 = vpow.pop %v732
  %v734 = vmul.f32 %v705, 1.442695
  %v735 = vpow.pop %v734
  %v736 = vmul.f32 %v706, 1.442695
  %v737 = vpow.pop %v736
  %v738 = vmul.f32 %v707, 1.442695
  %v739 = vpow.pop %v738
  %v740 = vsel %vm469, %v709, 0.0
  %v741 = vsel %vm470, %v711, 0.0
  %v742 = vsel %vm471, %v713, 0.0
  %v743 = vsel %vm472, %v715, 0.0
  %v744 = vsel %vm473, %v717, 0.0
  %v745 = vsel %vm474, %v719, 0.0
  %v746 = vsel %vm475, %v721, 0.0
  %v747 = vsel %vm476, %v723, 0.0
  %v748 = vsel %vm477, %v725, 0.0
  %v749 = vsel %vm478, %v727, 0.0
  %v750 = vsel %vm479, %v729, 0.0
  %v751 = vsel %vm480, %v731, 0.0
  %v752 = vsel %vm481, %v733, 0.0
  %v753 = vsel %vm482, %v735, 0.0
  %v754 = vsel %vm483, %v737, 0.0
  %v755 = vsel %vm484, %v739, 0.0
  %v756 = vsel %vm643, %v740, 0.0
  %757 = vadd.xlane.f32.xlu0 %v756
  %v758 = vpop.xlane.xlu0 %757
  %v759 = vsel %vm643, %v741, 0.0
  %760 = vadd.xlane.f32.xlu0 %v759
  %v761 = vpop.xlane.xlu0 %760
  %v762 = vsel %vm643, %v742, 0.0
  %763 = vadd.xlane.f32.xlu0 %v762
  %v764 = vpop.xlane.xlu0 %763
  %v765 = vsel %vm643, %v743, 0.0
  %766 = vadd.xlane.f32.xlu0 %v765
  %v767 = vpop.xlane.xlu0 %766
  %v768 = vsel %vm643, %v744, 0.0
  %769 = vadd.xlane.f32.xlu0 %v768
  %v770 = vpop.xlane.xlu0 %769
  %v771 = vsel %vm643, %v745, 0.0
  %772 = vadd.xlane.f32.xlu0 %v771
  %v773 = vpop.xlane.xlu0 %772
  %v774 = vsel %vm643, %v746, 0.0
  %775 = vadd.xlane.f32.xlu0 %v774
  %v776 = vpop.xlane.xlu0 %775
  %v777 = vsel %vm643, %v747, 0.0
  %778 = vadd.xlane.f32.xlu0 %v777
  %v779 = vpop.xlane.xlu0 %778
  %v780 = vsel %vm643, %v748, 0.0
  %781 = vadd.xlane.f32.xlu0 %v780
  %v782 = vpop.xlane.xlu0 %781
  %v783 = vsel %vm643, %v749, 0.0
  %784 = vadd.xlane.f32.xlu0 %v783
  %v785 = vpop.xlane.xlu0 %784
  %v786 = vsel %vm643, %v750, 0.0
  %787 = vadd.xlane.f32.xlu0 %v786
  %v788 = vpop.xlane.xlu0 %787
  %v789 = vsel %vm643, %v751, 0.0
  %790 = vadd.xlane.f32.xlu0 %v789
  %v791 = vpop.xlane.xlu0 %790
  %v792 = vsel %vm643, %v752, 0.0
  %793 = vadd.xlane.f32.xlu0 %v792
  %v794 = vpop.xlane.xlu0 %793
  %v795 = vsel %vm643, %v753, 0.0
  %796 = vadd.xlane.f32.xlu0 %v795
  %v797 = vpop.xlane.xlu0 %796
  %v798 = vsel %vm643, %v754, 0.0
  %799 = vadd.xlane.f32.xlu0 %v798
  %v800 = vpop.xlane.xlu0 %799
  %v801 = vsel %vm643, %v755, 0.0
  %802 = vadd.xlane.f32.xlu0 %v801
  %v803 = vpop.xlane.xlu0 %802
  %vm804 = vcmp.gt.f32.partialorder %v758, 0.0
  %vm805 = vcmp.gt.f32.partialorder %v761, 0.0
  %vm806 = vcmp.gt.f32.partialorder %v764, 0.0
  %vm807 = vcmp.gt.f32.partialorder %v767, 0.0
  %vm808 = vcmp.gt.f32.partialorder %v770, 0.0
  %vm809 = vcmp.gt.f32.partialorder %v773, 0.0
  %vm810 = vcmp.gt.f32.partialorder %v776, 0.0
  %vm811 = vcmp.gt.f32.partialorder %v779, 0.0
  %vm812 = vcmp.gt.f32.partialorder %v782, 0.0
  %vm813 = vcmp.gt.f32.partialorder %v785, 0.0
  %vm814 = vcmp.gt.f32.partialorder %v788, 0.0
  %vm815 = vcmp.gt.f32.partialorder %v791, 0.0
  %vm816 = vcmp.gt.f32.partialorder %v794, 0.0
  %vm817 = vcmp.gt.f32.partialorder %v797, 0.0
  %vm818 = vcmp.gt.f32.partialorder %v800, 0.0
  %vm819 = vcmp.gt.f32.partialorder %v803, 0.0
  %v820 = vsel %vm804, %v758, 1.0
  %v821 = vsel %vm805, %v761, 1.0
  %v822 = vsel %vm806, %v764, 1.0
  %v823 = vsel %vm807, %v767, 1.0
  %v824 = vsel %vm808, %v770, 1.0
  %v825 = vsel %vm809, %v773, 1.0
  %v826 = vsel %vm810, %v776, 1.0
  %v827 = vsel %vm811, %v779, 1.0
  %v828 = vsel %vm812, %v782, 1.0
  %v829 = vsel %vm813, %v785, 1.0
  %v830 = vsel %vm814, %v788, 1.0
  %v831 = vsel %vm815, %v791, 1.0
  %v832 = vsel %vm816, %v794, 1.0
  %v833 = vsel %vm817, %v797, 1.0
  %v834 = vsel %vm818, %v800, 1.0
  %v835 = vsel %vm819, %v803, 1.0
  %v836 = vrcp.pop %v820
  %v837 = vrcp.pop %v821
  %v838 = vrcp.pop %v822
  %v839 = vrcp.pop %v823
  %v840 = vrcp.pop %v824
  %v841 = vrcp.pop %v825
  %v842 = vrcp.pop %v826
  %v843 = vrcp.pop %v827
  %v844 = vrcp.pop %v828
  %v845 = vrcp.pop %v829
  %v846 = vrcp.pop %v830
  %v847 = vrcp.pop %v831
  %v848 = vrcp.pop %v832
  %v849 = vrcp.pop %v833
  %v850 = vrcp.pop %v834
  %v851 = vrcp.pop %v835
  %v852 = vmul.f32 %v740, %v836
  %v853 = vmul.f32 %v741, %v837
  %v854 = vmul.f32 %v742, %v838
  %v855 = vmul.f32 %v743, %v839
  %v856 = vmul.f32 %v744, %v840
  %v857 = vmul.f32 %v745, %v841
  %v858 = vmul.f32 %v746, %v842
  %v859 = vmul.f32 %v747, %v843
  %v860 = vmul.f32 %v748, %v844
  %v861 = vmul.f32 %v749, %v845
  %v862 = vmul.f32 %v750, %v846
  %v863 = vmul.f32 %v751, %v847
  %v864 = vmul.f32 %v752, %v848
  %v865 = vmul.f32 %v753, %v849
  %v866 = vmul.f32 %v754, %v850
  %v867 = vmul.f32 %v755, %v851
  %v868 = vpack.c.bf16 %v853, %v852
  %v869 = vpack.c.bf16 %v855, %v854
  %v870 = vpack.c.bf16 %v857, %v856
  %v871 = vpack.c.bf16 %v859, %v858
  %v872 = vpack.c.bf16 %v861, %v860
  %v873 = vpack.c.bf16 %v863, %v862
  %v874 = vpack.c.bf16 %v865, %v864
  %v875 = vpack.c.bf16 %v867, %v866
  %v877 = vsel %vm643, %v868, 0
  %v880 = vsel %vm643, %v869, 0
  %v883 = vsel %vm643, %v870, 0
  %v886 = vsel %vm643, %v871, 0
  %v889 = vsel %vm643, %v872, 0
  %v892 = vsel %vm643, %v873, 0
  %v895 = vsel %vm643, %v874, 0
  %v898 = vsel %vm643, %v875, 0
  %900 = vmatpush.bf16.msra.mxu0 0
  %901 = vmatpush.bf16.msra.mxu0 0
  %902 = vmatpush.bf16.msra.mxu0 0
  %903 = vmatpush.bf16.msra.mxu0 0
  %904 = vmatpush.bf16.msra.mxu0 %v92
  %905 = vmatpush.bf16.msra.mxu0 %v91
  %906 = vmatpush.bf16.msra.mxu0 %v90
  %907 = vmatpush.bf16.msra.mxu0 %v89
  %908 = vmatmul.bf16.gmra.mxu0 %v877
  %v909 = vpop.f32.mrf.mxu0
  %v910 = vadd.f32 0.0, %v909
  %v911 = vpop.f32.mrf.mxu0
  %v912 = vadd.f32 0.0, %v911
  %913 = vmatmul.bf16.gmra.mxu0 %v880
  %v914 = vpop.f32.mrf.mxu0
  %v915 = vadd.f32 0.0, %v914
  %v916 = vpop.f32.mrf.mxu0
  %v917 = vadd.f32 0.0, %v916
  %918 = vmatmul.bf16.gmra.mxu0 %v883
  %v919 = vpop.f32.mrf.mxu0
  %v920 = vadd.f32 0.0, %v919
  %v921 = vpop.f32.mrf.mxu0
  %v922 = vadd.f32 0.0, %v921
  %923 = vmatmul.bf16.gmra.mxu0 %v886
  %v924 = vpop.f32.mrf.mxu0
  %v925 = vadd.f32 0.0, %v924
  %v926 = vpop.f32.mrf.mxu0
  %v927 = vadd.f32 0.0, %v926
  %928 = vmatmul.bf16.gmra.mxu0 %v889
  %v929 = vpop.f32.mrf.mxu0
  %v930 = vadd.f32 0.0, %v929
  %v931 = vpop.f32.mrf.mxu0
  %v932 = vadd.f32 0.0, %v931
  %933 = vmatmul.bf16.gmra.mxu0 %v892
  %v934 = vpop.f32.mrf.mxu0
  %v935 = vadd.f32 0.0, %v934
  %v936 = vpop.f32.mrf.mxu0
  %v937 = vadd.f32 0.0, %v936
  %938 = vmatmul.bf16.gmra.mxu0 %v895
  %v939 = vpop.f32.mrf.mxu0
  %v940 = vadd.f32 0.0, %v939
  %v941 = vpop.f32.mrf.mxu0
  %v942 = vadd.f32 0.0, %v941
  %943 = vmatmul.bf16.gmra.mxu0 %v898
  %v944 = vpop.f32.mrf.mxu0
  %v945 = vadd.f32 0.0, %v944
  %v946 = vpop.f32.mrf.mxu0
  %v947 = vadd.f32 0.0, %v946
  %948 = vdwg.mxu0
  %v949 = vpack.c.bf16 %v912, %v910
  %v950 = vpack.c.bf16 %v917, %v915
  %v951 = vpack.c.bf16 %v922, %v920
  %v952 = vpack.c.bf16 %v927, %v925
  %v953 = vpack.c.bf16 %v932, %v930
  %v954 = vpack.c.bf16 %v937, %v935
  %v955 = vpack.c.bf16 %v942, %v940
  %v956 = vpack.c.bf16 %v947, %v945
  %v958 = vpack.i.b16 %v72, %v72
  %v960 = vperm.slane %v958, 0
  %v961 = vunpack.c.l.bf16 %v29
  %v962 = vunpack.c.l.bf16 %v30
  %v963 = vunpack.c.l.bf16 %v31
  %v964 = vunpack.c.l.bf16 %v32
  %v965 = vunpack.c.l.bf16 %v33
  %v966 = vunpack.c.l.bf16 %v34
  %v967 = vunpack.c.l.bf16 %v35
  %v968 = vunpack.c.l.bf16 %v36
  %v969 = vunpack.c.l.bf16 %v960
  %v970 = vmul.f32 %v961, %v969
  %v971 = vmul.f32 %v962, %v969
  %v972 = vmul.f32 %v963, %v969
  %v973 = vmul.f32 %v964, %v969
  %v974 = vmul.f32 %v965, %v969
  %v975 = vmul.f32 %v966, %v969
  %v976 = vmul.f32 %v967, %v969
  %v977 = vmul.f32 %v968, %v969
  %v978 = vpack.c.bf16 %v971, %v970
  %v979 = vpack.c.bf16 %v973, %v972
  %v980 = vpack.c.bf16 %v975, %v974
  %v981 = vpack.c.bf16 %v977, %v976
  %982 = vmatpush.bf16.xpose.msra.mxu0 %v956
  %983 = vmatpush.bf16.xpose.msra.mxu0 %v955
  %984 = vmatpush.bf16.xpose.msra.mxu0 %v954
  %985 = vmatpush.bf16.xpose.msra.mxu0 %v953
  %986 = vmatpush.bf16.xpose.msra.mxu0 %v952
  %987 = vmatpush.bf16.xpose.msra.mxu0 %v951
  %988 = vmatpush.bf16.xpose.msra.mxu0 %v950
  %989 = vmatpush.bf16.xpose.msra.mxu0 %v949
  %990 = vmatmul.bf16.gmra.mxu0 %v978
  %v991 = vpop.f32.mrf.mxu0
  %v992 = vadd.f32 0.0, %v991
  %v993 = vpop.f32.mrf.mxu0
  %v994 = vadd.f32 0.0, %v993
  %995 = vmatmul.bf16.gmra.mxu0 %v979
  %v996 = vpop.f32.mrf.mxu0
  %v997 = vadd.f32 0.0, %v996
  %v998 = vpop.f32.mrf.mxu0
  %v999 = vadd.f32 0.0, %v998
  %1000 = vmatmul.bf16.gmra.mxu0 %v980
  %v1001 = vpop.f32.mrf.mxu0
  %v1002 = vadd.f32 0.0, %v1001
  %v1003 = vpop.f32.mrf.mxu0
  %v1004 = vadd.f32 0.0, %v1003
  %1005 = vmatmul.bf16.gmra.mxu0 %v981
  %v1006 = vpop.f32.mrf.mxu0
  %v1007 = vadd.f32 0.0, %v1006
  %v1008 = vpop.f32.mrf.mxu0
  %v1009 = vadd.f32 0.0, %v1008
  %1010 = vdwg.mxu0
  %vm1011 = vcmp.ge.f32.partialorder %v992, 0.0
  %vm1012 = vcmp.ge.f32.partialorder %v994, 0.0
  %vm1013 = vcmp.ge.f32.partialorder %v997, 0.0
  %vm1014 = vcmp.ge.f32.partialorder %v999, 0.0
  %vm1015 = vcmp.ge.f32.partialorder %v1002, 0.0
  %vm1016 = vcmp.ge.f32.partialorder %v1004, 0.0
  %vm1017 = vcmp.ge.f32.partialorder %v1007, 0.0
  %vm1018 = vcmp.ge.f32.partialorder %v1009, 0.0
  %v1019 = vmul.f32 %v992, 0.2
  %v1020 = vmul.f32 %v994, 0.2
  %v1021 = vmul.f32 %v997, 0.2
  %v1022 = vmul.f32 %v999, 0.2
  %v1023 = vmul.f32 %v1002, 0.2
  %v1024 = vmul.f32 %v1004, 0.2
  %v1025 = vmul.f32 %v1007, 0.2
  %v1026 = vmul.f32 %v1009, 0.2
  %v1027 = vsel %vm1011, %v992, %v1019
  %v1028 = vsel %vm1012, %v994, %v1020
  %v1029 = vsel %vm1013, %v997, %v1021
  %v1030 = vsel %vm1014, %v999, %v1022
  %v1031 = vsel %vm1015, %v1002, %v1023
  %v1032 = vsel %vm1016, %v1004, %v1024
  %v1033 = vsel %vm1017, %v1007, %v1025
  %v1034 = vsel %vm1018, %v1009, %v1026
  %v1035 = vsel %vm413, %v1027, -1e+30
  %v1036 = vsel %vm414, %v1028, -1e+30
  %v1037 = vsel %vm415, %v1029, -1e+30
  %v1038 = vsel %vm416, %v1030, -1e+30
  %v1039 = vsel %vm417, %v1031, -1e+30
  %v1040 = vsel %vm418, %v1032, -1e+30
  %v1041 = vsel %vm419, %v1033, -1e+30
  %v1042 = vsel %vm420, %v1034, -1e+30
  %1043 = vmax.xlane.f32.xlu0 %v1035
  %v1044 = vpop.xlane.xlu0 %1043
  %1045 = vmax.xlane.f32.xlu0 %v1036
  %v1046 = vpop.xlane.xlu0 %1045
  %1047 = vmax.xlane.f32.xlu0 %v1037
  %v1048 = vpop.xlane.xlu0 %1047
  %1049 = vmax.xlane.f32.xlu0 %v1038
  %v1050 = vpop.xlane.xlu0 %1049
  %1051 = vmax.xlane.f32.xlu0 %v1039
  %v1052 = vpop.xlane.xlu0 %1051
  %1053 = vmax.xlane.f32.xlu0 %v1040
  %v1054 = vpop.xlane.xlu0 %1053
  %1055 = vmax.xlane.f32.xlu0 %v1041
  %v1056 = vpop.xlane.xlu0 %1055
  %1057 = vmax.xlane.f32.xlu0 %v1042
  %v1058 = vpop.xlane.xlu0 %1057
  %v1059 = vsub.f32 %v1035, %v1044
  %v1060 = vsub.f32 %v1036, %v1046
  %v1061 = vsub.f32 %v1037, %v1048
  %v1062 = vsub.f32 %v1038, %v1050
  %v1063 = vsub.f32 %v1039, %v1052
  %v1064 = vsub.f32 %v1040, %v1054
  %v1065 = vsub.f32 %v1041, %v1056
  %v1066 = vsub.f32 %v1042, %v1058
  %v1067 = vmul.f32 %v1059, 1.442695
  %v1068 = vpow.pop %v1067
  %v1069 = vmul.f32 %v1060, 1.442695
  %v1070 = vpow.pop %v1069
  %v1071 = vmul.f32 %v1061, 1.442695
  %v1072 = vpow.pop %v1071
  %v1073 = vmul.f32 %v1062, 1.442695
  %v1074 = vpow.pop %v1073
  %v1075 = vmul.f32 %v1063, 1.442695
  %v1076 = vpow.pop %v1075
  %v1077 = vmul.f32 %v1064, 1.442695
  %v1078 = vpow.pop %v1077
  %v1079 = vmul.f32 %v1065, 1.442695
  %v1080 = vpow.pop %v1079
  %v1081 = vmul.f32 %v1066, 1.442695
  %v1082 = vpow.pop %v1081
  %v1083 = vsel %vm413, %v1068, 0.0
  %v1084 = vsel %vm414, %v1070, 0.0
  %v1085 = vsel %vm415, %v1072, 0.0
  %v1086 = vsel %vm416, %v1074, 0.0
  %v1087 = vsel %vm417, %v1076, 0.0
  %v1088 = vsel %vm418, %v1078, 0.0
  %v1089 = vsel %vm419, %v1080, 0.0
  %v1090 = vsel %vm420, %v1082, 0.0
  %1091 = vadd.xlane.f32.xlu0 %v1083
  %v1092 = vpop.xlane.xlu0 %1091
  %1093 = vadd.xlane.f32.xlu0 %v1084
  %v1094 = vpop.xlane.xlu0 %1093
  %1095 = vadd.xlane.f32.xlu0 %v1085
  %v1096 = vpop.xlane.xlu0 %1095
  %1097 = vadd.xlane.f32.xlu0 %v1086
  %v1098 = vpop.xlane.xlu0 %1097
  %1099 = vadd.xlane.f32.xlu0 %v1087
  %v1100 = vpop.xlane.xlu0 %1099
  %1101 = vadd.xlane.f32.xlu0 %v1088
  %v1102 = vpop.xlane.xlu0 %1101
  %1103 = vadd.xlane.f32.xlu0 %v1089
  %v1104 = vpop.xlane.xlu0 %1103
  %1105 = vadd.xlane.f32.xlu0 %v1090
  %v1106 = vpop.xlane.xlu0 %1105
  %vm1107 = vcmp.gt.f32.partialorder %v1092, 0.0
  %vm1108 = vcmp.gt.f32.partialorder %v1094, 0.0
  %vm1109 = vcmp.gt.f32.partialorder %v1096, 0.0
  %vm1110 = vcmp.gt.f32.partialorder %v1098, 0.0
  %vm1111 = vcmp.gt.f32.partialorder %v1100, 0.0
  %vm1112 = vcmp.gt.f32.partialorder %v1102, 0.0
  %vm1113 = vcmp.gt.f32.partialorder %v1104, 0.0
  %vm1114 = vcmp.gt.f32.partialorder %v1106, 0.0
  %v1115 = vsel %vm1107, %v1092, 1.0
  %v1116 = vsel %vm1108, %v1094, 1.0
  %v1117 = vsel %vm1109, %v1096, 1.0
  %v1118 = vsel %vm1110, %v1098, 1.0
  %v1119 = vsel %vm1111, %v1100, 1.0
  %v1120 = vsel %vm1112, %v1102, 1.0
  %v1121 = vsel %vm1113, %v1104, 1.0
  %v1122 = vsel %vm1114, %v1106, 1.0
  %v1123 = vrcp.pop %v1115
  %v1124 = vrcp.pop %v1116
  %v1125 = vrcp.pop %v1117
  %v1126 = vrcp.pop %v1118
  %v1127 = vrcp.pop %v1119
  %v1128 = vrcp.pop %v1120
  %v1129 = vrcp.pop %v1121
  %v1130 = vrcp.pop %v1122
  %v1131 = vmul.f32 %v1083, %v1123
  %v1132 = vmul.f32 %v1084, %v1124
  %v1133 = vmul.f32 %v1085, %v1125
  %v1134 = vmul.f32 %v1086, %v1126
  %v1135 = vmul.f32 %v1087, %v1127
  %v1136 = vmul.f32 %v1088, %v1128
  %v1137 = vmul.f32 %v1089, %v1129
  %v1138 = vmul.f32 %v1090, %v1130
  %v1139 = vpack.c.bf16 %v1132, %v1131
  %v1140 = vpack.c.bf16 %v1134, %v1133
  %v1141 = vpack.c.bf16 %v1136, %v1135
  %v1142 = vpack.c.bf16 %v1138, %v1137
  %1143 = vmatpush.bf16.msra.mxu0 %v956
  %1144 = vmatpush.bf16.msra.mxu0 %v955
  %1145 = vmatpush.bf16.msra.mxu0 %v954
  %1146 = vmatpush.bf16.msra.mxu0 %v953
  %1147 = vmatpush.bf16.msra.mxu0 %v952
  %1148 = vmatpush.bf16.msra.mxu0 %v951
  %1149 = vmatpush.bf16.msra.mxu0 %v950
  %1150 = vmatpush.bf16.msra.mxu0 %v949
  %1151 = vmatmul.bf16.gmra.mxu0 %v1139
  %v1152 = vpop.f32.mrf.mxu0
  %v1153 = vadd.f32 0.0, %v1152
  %v1154 = vpop.f32.mrf.mxu0
  %v1155 = vadd.f32 0.0, %v1154
  %1156 = vmatmul.bf16.gmra.mxu0 %v1140
  %v1157 = vpop.f32.mrf.mxu0
  %v1158 = vadd.f32 0.0, %v1157
  %v1159 = vpop.f32.mrf.mxu0
  %v1160 = vadd.f32 0.0, %v1159
  %1161 = vmatmul.bf16.gmra.mxu0 %v1141
  %v1162 = vpop.f32.mrf.mxu0
  %v1163 = vadd.f32 0.0, %v1162
  %v1164 = vpop.f32.mrf.mxu0
  %v1165 = vadd.f32 0.0, %v1164
  %1166 = vmatmul.bf16.gmra.mxu0 %v1142
  %v1167 = vpop.f32.mrf.mxu0
  %v1168 = vadd.f32 0.0, %v1167
  %v1169 = vpop.f32.mrf.mxu0
  %v1170 = vadd.f32 0.0, %v1169
  %1171 = vdwg.mxu0
  %v1172 = vmul.f32 %v21, 0.5
  %v1173 = vmul.f32 %v22, 0.5
  %v1174 = vmul.f32 %v23, 0.5
  %v1175 = vmul.f32 %v24, 0.5
  %v1176 = vmul.f32 %v25, 0.5
  %v1177 = vmul.f32 %v26, 0.5
  %v1178 = vmul.f32 %v27, 0.5
  %v1179 = vmul.f32 %v28, 0.5
  %v1180 = vmul.f32 %v1153, 0.5
  %v1181 = vmul.f32 %v1155, 0.5
  %v1182 = vmul.f32 %v1158, 0.5
  %v1183 = vmul.f32 %v1160, 0.5
  %v1184 = vmul.f32 %v1163, 0.5
  %v1185 = vmul.f32 %v1165, 0.5
  %v1186 = vmul.f32 %v1168, 0.5
  %v1187 = vmul.f32 %v1170, 0.5
  %v1188 = vadd.f32 %v1172, %v1180
  %v1189 = vadd.f32 %v1173, %v1181
  %v1190 = vadd.f32 %v1174, %v1182
  %v1191 = vadd.f32 %v1175, %v1183
  %v1192 = vadd.f32 %v1176, %v1184
  %v1193 = vadd.f32 %v1177, %v1185
  %v1194 = vadd.f32 %v1178, %v1186
  %v1195 = vadd.f32 %v1179, %v1187
  %1196 = vst [vmem:[%s5] sm:$0xff] %v1188
  %1197 = vst [vmem:[%s5 + $0x8] sm:$0xff] %v1189
  %1198 = vst [vmem:[%s5 + $0x10] sm:$0xff] %v1190
  %1199 = vst [vmem:[%s5 + $0x18] sm:$0xff] %v1191
  %1200 = vst [vmem:[%s5 + $0x20] sm:$0xff] %v1192
  %1201 = vst [vmem:[%s5 + $0x28] sm:$0xff] %v1193
  %1202 = vst [vmem:[%s5 + $0x30] sm:$0xff] %v1194
  %1203 = vst [vmem:[%s5 + $0x38] sm:$0xff] %v1195
  // Predicated region
  $region22: #{intent_graph.1} parent=0 // pred_check
    _
  $region23: #{intent_graph.1} parent=0 // pred_check_branch
    %1205 = sbr.rel (0) target = $region25
  $region24: #{intent_graph.1} parent=0 // pred_region
    _
  $region25: #{intent_graph.1} parent=0 // pred_fallthru
    _
  // Predicated region
  $region26: #{intent_graph.1} parent=0 // pred_check
    _
  $region27: #{intent_graph.1} parent=0 // pred_check_branch
    %1207 = sbr.rel (0) target = $region29
  $region28: #{intent_graph.1} parent=0 // pred_region
    _
  $region29: #{intent_graph.1} parent=0 // pred_fallthru
    _

</llo_original>
